<compile_context>
chip_gen: v5e
topology: v5e:2x2
jax: 0.10.0
libtpu: 0.0.40
codegen_flags: <defaults>
</compile_context>

<pallas_src>
import functools
import math

import jax
import jax.numpy as jnp
from jax.experimental import pallas as pl
from jax.experimental.pallas import tpu as pltpu

LANE = 128                              # vreg lane width
VMEM_TILE_BUDGET = 40 * 1024 * 1024     # cap on the double-buffered working set
VMEM_LIMIT_BYTES = 48 * 1024 * 1024     # explicit scoped-VMEM limit (< v7x 64 MiB)


def _round_up(a: int, m: int) -> int:
    return ((a + m - 1) // m) * m


def fnet_kernel(x_ref, w_ref, b_ref, o_ref, *, num_classes: int):
    """One batch tile: logits = x @ W_t + b  ->  softmax over classes (dim=1)."""
    # Dropout(p=0.25) is identity in eval mode (no-op here).
    # MXU matmul in native dtype (bf16 fast path), f32 accumulation.
    logits = jnp.dot(x_ref[...], w_ref[...],
                     preferred_element_type=jnp.float32)          # (TB, Mp) f32
    logits = logits + b_ref[...]                                  # bias is f32 (1, Mp)

    # Mask the lane-padding class columns so they contribute ~0 to the softmax.
    m_pad = logits.shape[-1]
    if num_classes != m_pad:
        col = jax.lax.broadcasted_iota(jnp.int32, logits.shape, 1)
        logits = jnp.where(col < num_classes, logits, jnp.float32(-1e30))

    # Numerically-stable softmax; normalization via the EUP approx reciprocal
    # (frees VALU slots, rides alongside the exp on the EUP).
    m = jnp.max(logits, axis=-1, keepdims=True)
    e = jnp.exp(logits - m)
    s = jnp.sum(e, axis=-1, keepdims=True)
    probs = e * pl.reciprocal(s, approx=True)

    o_ref[...] = probs.astype(o_ref.dtype)


def fnet_forward(x, w_t, b, *, tile_b=None, compute_dtype=None):
    """Pallas-backed FNet forward: softmax(x @ w_t + b, axis=1).

    x:   (B, F)
    w_t: (F, M)   transposed nn.Linear weight
    b:   (M,) or (1, M)
    compute_dtype: optional dtype (e.g. jnp.bfloat16) for the MXU operands;
                   accumulation stays f32.  Output keeps x's original dtype.
    """
    B, F = x.shape
    F2, M = w_t.shape
    assert F == F2, "x feature dim must match weight"
    b = jnp.asarray(b).reshape(1, M).astype(jnp.float32)

    out_dtype = x.dtype
    if compute_dtype is not None:
        x = x.astype(compute_dtype)
        w_t = w_t.astype(compute_dtype)

    # (8,128) rule: sublane multiple depends on operand packing.
    sub = 16 if x.dtype == jnp.bfloat16 else 8

    # Lane-dense padding of the K (features) and class dims.
    Fp = _round_up(F, LANE)
    Mp = _round_up(M, LANE)

    x_bytes = jnp.dtype(x.dtype).itemsize
    w_bytes = jnp.dtype(w_t.dtype).itemsize
    o_bytes = jnp.dtype(out_dtype).itemsize

    def tile_vmem_bytes(tb):
        # Pallas double-buffers every input block and the output block.
        return (2 * tb * Fp * x_bytes          # streamed x tile
                + 2 * Fp * Mp * w_bytes        # resident weight (see NOTE below)
                + 2 * 1 * Mp * 4               # bias
                + 2 * tb * Mp * o_bytes)       # output tile

    if tile_b is None:
        # ~512 rows is the measured sweet spot; never exceed the (padded) batch.
        tile_b = min(512, _round_up(B, sub))
    tile_b = _round_up(max(int(tile_b), sub), sub)
    # Cap the tile so the double-buffered working set fits the VMEM budget
    # (re-derived for v7x's 64 MiB physical VMEM).
    while tile_b > sub and tile_vmem_bytes(tile_b) > VMEM_TILE_BUDGET:
        tile_b -= sub
    assert tile_vmem_bytes(tile_b) <= VMEM_LIMIT_BYTES, (
        "weight alone exceeds the VMEM budget; tile F/M as well")

    Bp = _round_up(B, tile_b)
    grid = (Bp // tile_b,)

    # Zero-pad to lane/sublane-friendly shapes.  Correctness: padded K columns
    # contribute 0 to the matmul, padded class columns are masked in-kernel,
    # padded batch rows are sliced off below.
    if (Bp, Fp) != (B, F):
        x = jnp.pad(x, ((0, Bp - B), (0, Fp - F)))
    if (Fp, Mp) != (F, M):
        w_t = jnp.pad(w_t, ((0, Fp - F), (0, Mp - M)))
    if Mp != M:
        b = jnp.pad(b, ((0, 0), (0, Mp - M)))

    kernel = functools.partial(fnet_kernel, num_classes=M)

    out_padded = pl.pallas_call(
        kernel,
        out_shape=jax.ShapeDtypeStruct((Bp, Mp), out_dtype),
        grid_spec=pltpu.PrefetchScalarGridSpec(
            num_scalar_prefetch=0,
            grid=grid,
            in_specs=[
                # Streamed batch tile of x (lane-dense: Fp multiple of 128).
                pl.BlockSpec((tile_b, Fp), lambda i: (i, 0)),
                # Resident weight (constant index across the batch grid).
                # TODO(synk): for large F*M, request pipeline_mode=pl.Buffered(1)
                #             here to drop the redundant second weight buffer
                #             under v7x's 64 MiB VMEM.
                pl.BlockSpec((Fp, Mp), lambda i: (0, 0)),
                # Bias (f32).
                pl.BlockSpec((1, Mp), lambda i: (0, 0)),
            ],
            # Lane-dense output (Mp multiple of 128 -> unmasked vst).
            out_specs=pl.BlockSpec((tile_b, Mp), lambda i: (i, 0)),
        ),
        compiler_params=pltpu.CompilerParams(
            # Independent batch tiles -> megacore-shardable on v7x.
            dimension_semantics=("parallel",),
            vmem_limit_bytes=VMEM_LIMIT_BYTES,
        ),
    )(x, w_t, b)

    return out_padded[:B, :M]


def reference_forward(x, w_t, b):
    logits = (x.astype(jnp.float32) @ w_t.astype(jnp.float32)
              + jnp.asarray(b).reshape(1, -1).astype(jnp.float32))
    return jax.nn.softmax(logits, axis=1)


if __name__ == "__main__":
    # Small shapes consistent with FNet(in_features, num_classes, dtype).
    B = 8
    IN_FEATURES = 32
    NUM_CLASSES = 16
    dtype = jnp.float32

    key = jax.random.PRNGKey(0)
    kx, kw, kb = jax.random.split(key, 3)

    x = jax.random.normal(kx, (B, IN_FEATURES), dtype=dtype)

    # nn.Linear-style uniform(-1/sqrt(F), 1/sqrt(F)) init; PyTorch weight layout (M, F).
    bound = 1.0 / math.sqrt(IN_FEATURES)
    w = jax.random.uniform(kw, (NUM_CLASSES, IN_FEATURES), dtype=dtype,
                           minval=-bound, maxval=bound)
    b = jax.random.uniform(kb, (NUM_CLASSES,), dtype=dtype,
                           minval=-bound, maxval=bound)
    w_t = jnp.transpose(w)                                        # (F, M) for x @ w_t

    # f32 path.
    out = jax.block_until_ready(fnet_forward(x, w_t, b))
    ref = reference_forward(x, w_t, b)
    assert out.shape == (B, NUM_CLASSES)
    assert out.dtype == dtype
    # Tolerance relaxed slightly for the approx-reciprocal softmax normalization.
    assert jnp.allclose(out, ref, atol=5e-3, rtol=5e-3)
    assert jnp.allclose(jnp.sum(out, axis=1), 1.0, atol=5e-3)

    # bf16 MXU fast path (f32 accumulation inside the kernel).
    out_bf = jax.block_until_ready(
        fnet_forward(x, w_t, b, compute_dtype=jnp.bfloat16))
    ref_bf = reference_forward(x.astype(jnp.bfloat16), w_t.astype(jnp.bfloat16), b)
    assert out_bf.shape == (B, NUM_CLASSES)
    assert jnp.allclose(out_bf, ref_bf, atol=5e-3, rtol=5e-3)
    assert jnp.allclose(jnp.sum(out_bf, axis=1), 1.0, atol=5e-3)

    print("KERNEL_OK")
</pallas_src>

<mosaic_0001>
module attributes {stable_mosaic.version = 11 : i64} {
  func.func @fnet_kernel(%arg0: i32, %arg1: memref<8x128xf32, #tpu.memory_space<vmem>>, %arg2: memref<128x128xf32, #tpu.memory_space<vmem>>, %arg3: memref<1x128xf32, #tpu.memory_space<vmem>>, %arg4: memref<8x128xf32, #tpu.memory_space<vmem>>) attributes {dimension_semantics = [#tpu.dimension_semantics<parallel>], iteration_bounds = array<i64: 1>, scalar_prefetch = 0 : i64, scratch_operands = 0 : i64, tpu.core_type = #tpu.core_type<tc>, window_params = [{transform_indices = @transform_0, window_bounds = array<i64: 8, 128>}, {pipeline_mode = #tpu.pipeline_mode<synchronous>, transform_indices = @transform_1, window_bounds = array<i64: 128, 128>}, {pipeline_mode = #tpu.pipeline_mode<synchronous>, transform_indices = @transform_2, window_bounds = array<i64: 1, 128>}, {transform_indices = @transform_3, window_bounds = array<i64: 8, 128>}]} {
    %c0 = arith.constant 0 : index
    %c0_0 = arith.constant 0 : index
    %0 = vector.load %arg1[%c0, %c0_0] : memref<8x128xf32, #tpu.memory_space<vmem>>, vector<8x128xf32>
    %c0_1 = arith.constant 0 : index
    %c0_2 = arith.constant 0 : index
    %1 = vector.load %arg2[%c0_1, %c0_2] : memref<128x128xf32, #tpu.memory_space<vmem>>, vector<128x128xf32>
    %cst = arith.constant dense<0.000000e+00> : vector<8x128xf32>
    %2 = tpu.matmul %0, %1, %cst {dimension_numbers = #tpu.dot_dimension_numbers<[1], [0], [0], [1], [0, 0, 1, 1], [], []>} : vector<8x128xf32>, vector<128x128xf32>, vector<8x128xf32> -> vector<8x128xf32>
    %c0_3 = arith.constant 0 : index
    %c0_4 = arith.constant 0 : index
    %3 = vector.load %arg3[%c0_3, %c0_4] : memref<1x128xf32, #tpu.memory_space<vmem>>, vector<1x128xf32>
    %4 = vector.broadcast %3 : vector<1x128xf32> to vector<8x128xf32>
    %5 = arith.addf %2, %4 : vector<8x128xf32>
    %6 = tpu.iota {dimensions = array<i32: 1>} : vector<8x128xi32>
    %c16_i32 = arith.constant 16 : i32
    %7 = vector.broadcast %c16_i32 : i32 to vector<8x128xi32>
    %8 = arith.cmpi slt, %6, %7 : vector<8x128xi32>
    %cst_5 = arith.constant -1.000000e+30 : f32
    %9 = vector.broadcast %cst_5 : f32 to vector<8x128xf32>
    %10 = arith.select %8, %5, %9 : vector<8x128xi1>, vector<8x128xf32>
    %cst_6 = arith.constant dense<0xFF800000> : vector<8xf32>
    %11 = vector.multi_reduction <maximumf>, %10, %cst_6 [1] : vector<8x128xf32> to vector<8xf32>
    %12 = vector.shape_cast %11 : vector<8xf32> to vector<8x1xf32>
    %13 = vector.broadcast %12 : vector<8x1xf32> to vector<8x128xf32>
    %14 = arith.subf %10, %13 : vector<8x128xf32>
    %15 = math.exp %14 : vector<8x128xf32>
    %cst_7 = arith.constant dense<0.000000e+00> : vector<8xf32>
    %16 = vector.multi_reduction <add>, %15, %cst_7 [1] : vector<8x128xf32> to vector<8xf32>
    %17 = vector.shape_cast %16 : vector<8xf32> to vector<8x1xf32>
    %18 = tpu.reciprocal %17 {approx = true} : vector<8x1xf32> -> vector<8x1xf32>
    %19 = vector.broadcast %18 : vector<8x1xf32> to vector<8x128xf32>
    %20 = arith.mulf %15, %19 : vector<8x128xf32>
    %c0_8 = arith.constant 0 : index
    %c0_9 = arith.constant 0 : index
    %21 = vector.load %arg4[%c0_8, %c0_9] : memref<8x128xf32, #tpu.memory_space<vmem>>, vector<8x128xf32>
    tpu.vector_store %arg4[%c0_8, %c0_9], %20 {strides = array<i32>} : memref<8x128xf32, #tpu.memory_space<vmem>>, vector<8x128xf32>,
    return
  }
  func.func @transform_0(%arg0: i32) -> (i32, i32) {
    %c0_i32 = arith.constant 0 : i32
    %c0_i32_0 = arith.constant 0 : i32
    return %arg0, %c0_i32 : i32, i32
  }
  func.func @transform_1(%arg0: i32) -> (i32, i32) {
    %c0_i32 = arith.constant 0 : i32
    %c0_i32_0 = arith.constant 0 : i32
    %c0_i32_1 = arith.constant 0 : i32
    return %c0_i32, %c0_i32_0 : i32, i32
  }
  func.func @transform_2(%arg0: i32) -> (i32, i32) {
    %c0_i32 = arith.constant 0 : i32
    %c0_i32_0 = arith.constant 0 : i32
    %c0_i32_1 = arith.constant 0 : i32
    return %c0_i32, %c0_i32_0 : i32, i32
  }
  func.func @transform_3(%arg0: i32) -> (i32, i32) {
    %c0_i32 = arith.constant 0 : i32
    %c0_i32_0 = arith.constant 0 : i32
    return %arg0, %c0_i32 : i32, i32
  }
}

</mosaic_0001>

<llo_original>
// kernel: tpu_custom_call.1
$region0: #{tpu_custom_call.1}
  #allocation0 [shape = 'u32[]', space=smem, size = 0x4, offset = 0x4, fixed_abs, tag = 'smem constant byte address 0x4 - core index']
  #allocation1 [shape = 'u32[72,128]{1,0:T(1,128)}', space=vmem, size = 0x9000, scoped, tag = 'internal scratch']
  %s0 = inlined_call_operand.hbm [shape: f32[8,128], index: 0, kind: input, shape index: {}]
  %s1 = inlined_call_operand.hbm [shape: f32[128,128], index: 1, kind: input, shape index: {}]
  %s2 = inlined_call_operand.vmem [shape: f32[1,128], index: 2, kind: input, shape index: {}]
  %s3 = inlined_call_operand.hbm [shape: f32[8,128], index: 3, kind: output, shape index: {}]
  %s4 = sld [smem:[#allocation0]]
  $region30: #{tpu_custom_call.1} parent=0
    _
  %s6 = ssub.s32 1, %s4
  %s7 = scalar_select 0, %s6, %s4
  $region1: #{tpu_custom_call.1} parent=0
    #allocation2 [shape = 'u8[4096]{0}', space=vmem, size = 0x1000, scoped, tag = 'input window, operand 0, single buffered']
    #allocation3 [shape = 's32[1]{0}', space=sflag, size = 0x4, scoped, tag = 'scoped memory for tpu_custom_call.1']
    #allocation4 [shape = 's32[1]{0}', space=sflag, size = 0x4, scoped, tag = 'scoped memory for tpu_custom_call.1']
    #allocation5 [shape = 'u8[65536]{0}', space=vmem, size = 0x10000, scoped, tag = 'input window, operand 1, single buffered']
    #allocation6 [shape = 's32[1]{0}', space=sflag, size = 0x4, scoped, tag = 'scoped memory for tpu_custom_call.1']
    #allocation7 [shape = 'u8[4096]{0}', space=vmem, size = 0x1000, scoped, tag = 'output window, operand 0, single buffered']
    %8 = vsyncpa [#allocation3], 0
    %9 = vsyncpa [#allocation6], 0
    %10 = vsyncpa [#allocation4], 0
    // Predicated region
    $region2: #{tpu_custom_call.1} parent=1 // pred_check
      _
    $region3: #{tpu_custom_call.1} parent=1 // pred_check_branch
      %12 = sbr.rel (0) target = $region5
    $region4: #{tpu_custom_call.1} parent=1 // pred_region
      %14 = vsyncadd [#allocation3], 0
      %s16 = sshll.u32 %s0, 4
      %s17 = int_to_ptr.hbm [resolvable:$true] %s16
      %s18 = sshll.u32 [#allocation2], 4
      %s19 = int_to_ptr.vmem [resolvable:$true] %s18
      %21 = dma.hbm_to_vmem [thread:$0]  %s17, 128, %s19, [#allocation3]
    $region5: #{tpu_custom_call.1} parent=1 // pred_fallthru
      _
    // Predicated region
    $region6: #{tpu_custom_call.1} parent=1 // pred_check
      _
    $region7: #{tpu_custom_call.1} parent=1 // pred_check_branch
      %23 = sbr.rel (0) target = $region9
    $region8: #{tpu_custom_call.1} parent=1 // pred_region
      %25 = vsyncadd [#allocation6], 0
      %s26 = sshll.u32 %s1, 4
      %s27 = int_to_ptr.hbm [resolvable:$true] %s26
      %s28 = sshll.u32 [#allocation5], 4
      %s29 = int_to_ptr.vmem [resolvable:$true] %s28
      %34 = dma.hbm_to_vmem [thread:$0]  %s27, 2048, %s29, [#allocation6], 128, 128, 8
    $region9: #{tpu_custom_call.1} parent=1 // pred_fallthru
      _
    // Predicated region
    $region10: #{tpu_custom_call.1} parent=1 // pred_check
      _
    $region11: #{tpu_custom_call.1} parent=1 // pred_check_branch
      %36 = sbr.rel (0) target = $region13
    $region12: #{tpu_custom_call.1} parent=1 // pred_region
      _
    $region13: #{tpu_custom_call.1} parent=1 // pred_fallthru
      _
    // Predicated region
    $region14: #{tpu_custom_call.1} parent=1 // pred_check
      _
    $region15: #{tpu_custom_call.1} parent=1 // pred_check_branch
      %38 = sbr.rel (0) target = $region17
    $region16: #{tpu_custom_call.1} parent=1 // pred_region
      %40 = dma.done [#allocation3], 128
    $region17: #{tpu_custom_call.1} parent=1 // pred_fallthru
      _
    // Predicated region
    $region18: #{tpu_custom_call.1} parent=1 // pred_check
      _
    $region19: #{tpu_custom_call.1} parent=1 // pred_check_branch
      %42 = sbr.rel (0) target = $region21
    $region20: #{tpu_custom_call.1} parent=1 // pred_region
      %44 = dma.done [#allocation6], 2048
    $region21: #{tpu_custom_call.1} parent=1 // pred_fallthru
      _
    %v45 = vld [vmem:[#allocation2] sm:$0xff]
    %v46 = vld [vmem:[#allocation5] sm:$0xff]
    %v47 = vld [vmem:[#allocation5 + $0x8] sm:$0xff]
    %v48 = vld [vmem:[#allocation5 + $0x10] sm:$0xff]
    %v49 = vld [vmem:[#allocation5 + $0x18] sm:$0xff]
    %v50 = vld [vmem:[#allocation5 + $0x20] sm:$0xff]
    %v51 = vld [vmem:[#allocation5 + $0x28] sm:$0xff]
    %v52 = vld [vmem:[#allocation5 + $0x30] sm:$0xff]
    %v53 = vld [vmem:[#allocation5 + $0x38] sm:$0xff]
    %v54 = vld [vmem:[#allocation5 + $0x40] sm:$0xff]
    %v55 = vld [vmem:[#allocation5 + $0x48] sm:$0xff]
    %v56 = vld [vmem:[#allocation5 + $0x50] sm:$0xff]
    %v57 = vld [vmem:[#allocation5 + $0x58] sm:$0xff]
    %v58 = vld [vmem:[#allocation5 + $0x60] sm:$0xff]
    %v59 = vld [vmem:[#allocation5 + $0x68] sm:$0xff]
    %v60 = vld [vmem:[#allocation5 + $0x70] sm:$0xff]
    %v61 = vld [vmem:[#allocation5 + $0x78] sm:$0xff]
    %v62 = vld [vmem:[%s2] sm:$0x1]
    %v64 = vperm.slane %v62, 0
    %66 = vmatpush.msra.mxu0 %v61
    %67 = vmatpush.msra.mxu0 %v60
    %68 = vmatpush.msra.mxu0 %v59
    %69 = vmatpush.msra.mxu0 %v58
    %70 = vmatpush.msra.mxu0 %v57
    %71 = vmatpush.msra.mxu0 %v56
    %72 = vmatpush.msra.mxu0 %v55
    %73 = vmatpush.msra.mxu0 %v54
    %74 = vmatpush.msra.mxu0 %v53
    %75 = vmatpush.msra.mxu0 %v52
    %76 = vmatpush.msra.mxu0 %v51
    %77 = vmatpush.msra.mxu0 %v50
    %78 = vmatpush.msra.mxu0 %v49
    %79 = vmatpush.msra.mxu0 %v48
    %80 = vmatpush.msra.mxu0 %v47
    %81 = vmatpush.msra.mxu0 %v46
    %82 = vmatmul.f32.gmra.mxu0 %v45
    %v83 = vpop.f32.mrf.mxu0
    %v84 = vadd.f32 %v64, %v83
    %85 = vdwg.mxu0
    %v86 = vlaneseq
    %v87 = vand.u32 %v86, 127
    %vm88 = vcmp.lt.s32.totalorder %v87, 16
    %v89 = vsel %vm88, %v84, -1e+30
    %90 = vmax.xlane.f32.xlu0 %v89
    %v91 = vpop.xlane.xlu0 %90
    %v92 = vsub.f32 %v89, %v91
    %v93 = vmul.f32 %v92, 1.442695
    %v94 = vpow.pop %v93
    %95 = vadd.xlane.f32.xlu0 %v94
    %v96 = vpop.xlane.xlu0 %95
    %v97 = vrcp.pop %v96
    %v98 = vmul.f32 %v94, %v97
    %99 = vst [vmem:[#allocation7] sm:$0xff] %v98
    // Predicated region
    $region22: #{tpu_custom_call.1} parent=1 // pred_check
      _
    $region23: #{tpu_custom_call.1} parent=1 // pred_check_branch
      %101 = sbr.rel (0) target = $region25
    $region24: #{tpu_custom_call.1} parent=1 // pred_region
      %103 = vsyncadd [#allocation4], 0
      %s105 = sshll.u32 [#allocation7], 4
      %s106 = int_to_ptr.vmem [resolvable:$true] %s105
      %s107 = sshll.u32 %s3, 4
      %s108 = int_to_ptr.hbm [resolvable:$true] %s107
      %110 = dma.vmem_to_hbm [thread:$0]  %s106, 128, %s108, [#allocation4]
    $region25: #{tpu_custom_call.1} parent=1 // pred_fallthru
      _
    // Predicated region
    $region26: #{tpu_custom_call.1} parent=1 // pred_check
      _
    $region27: #{tpu_custom_call.1} parent=1 // pred_check_branch
      %112 = sbr.rel (0) target = $region29
    $region28: #{tpu_custom_call.1} parent=1 // pred_region
      %114 = dma.done [#allocation4], 128
    $region29: #{tpu_custom_call.1} parent=1 // pred_fallthru
      _
    %115 = vsyncpa [#allocation3], 1
    %116 = vsyncpa [#allocation6], 1
    %117 = vsyncpa [#allocation4], 1

</llo_original>
